<compile_context>
chip_gen: v7x
topology: tpu7x:2x2x1
jax: 0.10.0
libtpu: 0.0.40
codegen_flags: <defaults>
</compile_context>

<pallas_src>
import jax
import jax.numpy as jnp
from jax.experimental import pallas as pl
from jax.experimental.pallas import tpu as pltpu


def _make_se_kernel(inv_hw: float):
    """Build the SE kernel with the 1/HW reciprocal baked in as a constant."""

    def kernel(x_ref, w1t_ref, b1_ref, w2t_ref, b2_ref, o_ref):
        # x_ref: (Nb, C, HWp) in the input dtype.
        x = x_ref[...]

        # adaptive_avg_pool2d(x, (1,1)): per-channel spatial mean.
        # Accumulate in f32 (safe for bf16 inputs), multiply by the Python
        # constant 1/HW (padded lanes are zero and contribute nothing).
        pooled = jnp.sum(x.astype(jnp.float32), axis=2) * inv_hw      # (Nb, C)

        # fc1 (1x1 conv) + SiLU:  (Nb, C) @ (C, Cs) + b1
        h = jnp.dot(pooled, w1t_ref[...],
                    preferred_element_type=jnp.float32) + b1_ref[...]  # (Nb, Cs)
        h = h * jax.nn.sigmoid(h)

        # fc2 (1x1 conv) + Sigmoid:  (Nb, Cs) @ (Cs, C) + b2
        s = jnp.dot(h, w2t_ref[...],
                    preferred_element_type=jnp.float32) + b2_ref[...]  # (Nb, C)
        s = jax.nn.sigmoid(s)

        # Full-tile scale in the *input* dtype (no f32 upcast of the tile).
        o_ref[...] = s.astype(x.dtype)[:, :, None] * x

    return kernel


def _pick_batch_block(n: int, bytes_per_image: int,
                      target_bytes: int = 2 << 20,
                      min_split_bytes: int = 1 << 20) -> int:
    """Largest divisor Nb of N with Nb*image_bytes <= ~2 MiB; keep >=2 grid
    steps (v7x has 2 TensorCores) when the per-image block is already big."""
    divisors = [d for d in range(1, n + 1) if n % d == 0]
    nb = 1
    for d in divisors:
        if d * bytes_per_image <= target_bytes:
            nb = d
    if n // nb == 1 and n > 1 and bytes_per_image >= min_split_bytes:
        nb = max(d for d in divisors if n // d >= 2)
    return nb


def squeeze_excitation(x, w1, b1, w2, b2):
    """x: (N, C, H, W) NCHW.  w1: (Cs, C), b1: (Cs, 1), w2: (C, Cs), b2: (C, 1)."""
    N, C, H, W = x.shape
    Cs = w1.shape[0]
    HW = H * W

    # Lane-dense layout: pad the flattened spatial axis to a multiple of 128.
    HWp = ((HW + 127) // 128) * 128
    xf = x.reshape(N, C, HW)
    if HWp != HW:
        xf = jnp.pad(xf, ((0, 0), (0, 0), (0, HWp - HW)))

    # Weights as matmul-friendly operands (pure wrapper glue, tiny arrays).
    w1t = jnp.transpose(w1)          # (C, Cs)
    w2t = jnp.transpose(w2)          # (Cs, C)
    b1r = jnp.reshape(b1, (1, Cs))   # broadcast over Nb
    b2r = jnp.reshape(b2, (1, C))

    itemsize = jnp.dtype(x.dtype).itemsize
    bytes_per_image = C * HWp * itemsize
    nb = _pick_batch_block(N, bytes_per_image)
    grid = (N // nb,)

    # Mem-bound cost hint for XLA's scheduler (read x once, write out once).
    cost = pl.CostEstimate(
        flops=4 * N * C * HW + 4 * N * C * Cs,
        transcendentals=N * (2 * Cs + C),
        bytes_accessed=2 * N * C * HW * itemsize
        + (2 * C * Cs + C + Cs) * 4,
    )

    out = pl.pallas_call(
        _make_se_kernel(1.0 / float(HW)),
        out_shape=jax.ShapeDtypeStruct((N, C, HWp), x.dtype),
        grid=grid,
        in_specs=[
            pl.BlockSpec((nb, C, HWp), lambda n: (n, 0, 0)),
            pl.BlockSpec((C, Cs), lambda n: (0, 0)),
            pl.BlockSpec((1, Cs), lambda n: (0, 0)),
            pl.BlockSpec((Cs, C), lambda n: (0, 0)),
            pl.BlockSpec((1, C), lambda n: (0, 0)),
        ],
        out_specs=pl.BlockSpec((nb, C, HWp), lambda n: (n, 0, 0)),
        compiler_params=pltpu.CompilerParams(
            dimension_semantics=("parallel",),
            # Blocks are capped at ~2 MiB; 32 MiB scoped VMEM leaves plenty of
            # headroom for double-buffered in+out even on v7x's 64 MiB VMEM.
            vmem_limit_bytes=32 * 1024 * 1024,
        ),
        cost_estimate=cost,
    )(xf, w1t, b1r, w2t, b2r)

    if HWp != HW:
        out = out[:, :, :HW]
    return out.reshape(N, C, H, W)


def _reference(x, w1, b1, w2, b2):
    # pure-JAX reference of the PyTorch forward
    pooled = jnp.mean(x, axis=(2, 3), keepdims=True)            # (N, C, 1, 1)
    h = jnp.einsum('sc,nchw->nshw', w1, pooled) + b1[None, :, :, None]
    h = h * jax.nn.sigmoid(h)
    s = jnp.einsum('cs,nshw->nchw', w2, h) + b2[None, :, :, None]
    s = jax.nn.sigmoid(s)
    return s * x


if __name__ == "__main__":
    # module config: input_c=8, squeeze_factor=4 -> squeeze_c=2
    N, C, H, W = 2, 8, 16, 16
    Cs = C // 4

    key = jax.random.PRNGKey(0)
    kx, k1, k2, k3, k4 = jax.random.split(key, 5)

    x = jax.random.normal(kx, (N, C, H, W), dtype=jnp.float32)
    # 1x1 conv weights (out_c, in_c), biases kept as (out_c, 1) columns
    w1 = jax.random.normal(k1, (Cs, C), dtype=jnp.float32) * 0.1
    b1 = jax.random.normal(k2, (Cs, 1), dtype=jnp.float32) * 0.1
    w2 = jax.random.normal(k3, (C, Cs), dtype=jnp.float32) * 0.1
    b2 = jax.random.normal(k4, (C, 1), dtype=jnp.float32) * 0.1

    out = squeeze_excitation(x, w1, b1, w2, b2)
    out = jax.block_until_ready(out)

    ref = _reference(x, w1, b1, w2, b2)
    assert out.shape == (N, C, H, W)
    assert jnp.allclose(out, ref, atol=1e-5, rtol=1e-5), "mismatch vs reference"

    print("KERNEL_OK")
</pallas_src>

<mosaic_0001>
module attributes {stable_mosaic.version = 11 : i64} {
  func.func @kernel(%arg0: i32, %arg1: memref<2x8x256xf32, #tpu.memory_space<vmem>>, %arg2: memref<8x2xf32, #tpu.memory_space<vmem>>, %arg3: memref<1x2xf32, #tpu.memory_space<vmem>>, %arg4: memref<2x8xf32, #tpu.memory_space<vmem>>, %arg5: memref<1x8xf32, #tpu.memory_space<vmem>>, %arg6: memref<2x8x256xf32, #tpu.memory_space<vmem>>) attributes {dimension_semantics = [#tpu.dimension_semantics<parallel>], iteration_bounds = array<i64: 1>, scalar_prefetch = 0 : i64, scratch_operands = 0 : i64, tpu.core_type = #tpu.core_type<tc>, window_params = [{transform_indices = @transform_0, window_bounds = array<i64: 2, 8, 256>}, {pipeline_mode = #tpu.pipeline_mode<synchronous>, transform_indices = @transform_1, window_bounds = array<i64: 8, 2>}, {pipeline_mode = #tpu.pipeline_mode<synchronous>, transform_indices = @transform_2, window_bounds = array<i64: 1, 2>}, {pipeline_mode = #tpu.pipeline_mode<synchronous>, transform_indices = @transform_3, window_bounds = array<i64: 2, 8>}, {pipeline_mode = #tpu.pipeline_mode<synchronous>, transform_indices = @transform_4, window_bounds = array<i64: 1, 8>}, {transform_indices = @transform_5, window_bounds = array<i64: 2, 8, 256>}]} {
    %c0 = arith.constant 0 : index
    %c0_0 = arith.constant 0 : index
    %c0_1 = arith.constant 0 : index
    %0 = vector.load %arg1[%c0, %c0_0, %c0_1] : memref<2x8x256xf32, #tpu.memory_space<vmem>>, vector<2x8x256xf32>
    %cst = arith.constant dense<0.000000e+00> : vector<2x8xf32>
    %1 = vector.multi_reduction <add>, %0, %cst [2] : vector<2x8x256xf32> to vector<2x8xf32>
    %cst_2 = arith.constant 3.906250e-03 : f32
    %2 = vector.broadcast %cst_2 : f32 to vector<2x8xf32>
    %3 = arith.mulf %1, %2 : vector<2x8xf32>
    %c0_3 = arith.constant 0 : index
    %c0_4 = arith.constant 0 : index
    %4 = vector.load %arg2[%c0_3, %c0_4] : memref<8x2xf32, #tpu.memory_space<vmem>>, vector<8x2xf32>
    %cst_5 = arith.constant dense<0.000000e+00> : vector<2x2xf32>
    %5 = tpu.matmul %3, %4, %cst_5 {dimension_numbers = #tpu.dot_dimension_numbers<[1], [0], [0], [1], [0, 0, 1, 1], [], []>} : vector<2x8xf32>, vector<8x2xf32>, vector<2x2xf32> -> vector<2x2xf32>
    %c0_6 = arith.constant 0 : index
    %c0_7 = arith.constant 0 : index
    %6 = vector.load %arg3[%c0_6, %c0_7] : memref<1x2xf32, #tpu.memory_space<vmem>>, vector<1x2xf32>
    %7 = vector.broadcast %6 : vector<1x2xf32> to vector<2x2xf32>
    %8 = arith.addf %5, %7 : vector<2x2xf32>
    %9 = arith.negf %8 : vector<2x2xf32>
    %10 = math.exp %9 : vector<2x2xf32>
    %cst_8 = arith.constant 1.000000e+00 : f32
    %11 = vector.broadcast %cst_8 : f32 to vector<2x2xf32>
    %12 = arith.addf %11, %10 : vector<2x2xf32>
    %13 = arith.divf %11, %12 : vector<2x2xf32>
    %14 = arith.mulf %8, %13 : vector<2x2xf32>
    %c0_9 = arith.constant 0 : index
    %c0_10 = arith.constant 0 : index
    %15 = vector.load %arg4[%c0_9, %c0_10] : memref<2x8xf32, #tpu.memory_space<vmem>>, vector<2x8xf32>
    %cst_11 = arith.constant dense<0.000000e+00> : vector<2x8xf32>
    %16 = tpu.matmul %14, %15, %cst_11 {dimension_numbers = #tpu.dot_dimension_numbers<[1], [0], [0], [1], [0, 0, 1, 1], [], []>} : vector<2x2xf32>, vector<2x8xf32>, vector<2x8xf32> -> vector<2x8xf32>
    %c0_12 = arith.constant 0 : index
    %c0_13 = arith.constant 0 : index
    %17 = vector.load %arg5[%c0_12, %c0_13] : memref<1x8xf32, #tpu.memory_space<vmem>>, vector<1x8xf32>
    %18 = vector.broadcast %17 : vector<1x8xf32> to vector<2x8xf32>
    %19 = arith.addf %16, %18 : vector<2x8xf32>
    %20 = arith.negf %19 : vector<2x8xf32>
    %21 = math.exp %20 : vector<2x8xf32>
    %cst_14 = arith.constant 1.000000e+00 : f32
    %22 = vector.broadcast %cst_14 : f32 to vector<2x8xf32>
    %23 = arith.addf %22, %21 : vector<2x8xf32>
    %24 = arith.divf %22, %23 : vector<2x8xf32>
    %25 = vector.shape_cast %24 : vector<2x8xf32> to vector<2x8x1xf32>
    %26 = vector.broadcast %25 : vector<2x8x1xf32> to vector<2x8x256xf32>
    %27 = arith.mulf %26, %0 : vector<2x8x256xf32>
    %c0_15 = arith.constant 0 : index
    %c0_16 = arith.constant 0 : index
    %c0_17 = arith.constant 0 : index
    %28 = vector.load %arg6[%c0_15, %c0_16, %c0_17] : memref<2x8x256xf32, #tpu.memory_space<vmem>>, vector<2x8x256xf32>
    tpu.vector_store %arg6[%c0_15, %c0_16, %c0_17], %27 {strides = array<i32>} : memref<2x8x256xf32, #tpu.memory_space<vmem>>, vector<2x8x256xf32>,
    return
  }
  func.func @transform_0(%arg0: i32) -> (i32, i32, i32) {
    %c0_i32 = arith.constant 0 : i32
    %c0_i32_0 = arith.constant 0 : i32
    %c0_i32_1 = arith.constant 0 : i32
    return %arg0, %c0_i32, %c0_i32_0 : i32, i32, i32
  }
  func.func @transform_1(%arg0: i32) -> (i32, i32) {
    %c0_i32 = arith.constant 0 : i32
    %c0_i32_0 = arith.constant 0 : i32
    %c0_i32_1 = arith.constant 0 : i32
    return %c0_i32, %c0_i32_0 : i32, i32
  }
  func.func @transform_2(%arg0: i32) -> (i32, i32) {
    %c0_i32 = arith.constant 0 : i32
    %c0_i32_0 = arith.constant 0 : i32
    %c0_i32_1 = arith.constant 0 : i32
    return %c0_i32, %c0_i32_0 : i32, i32
  }
  func.func @transform_3(%arg0: i32) -> (i32, i32) {
    %c0_i32 = arith.constant 0 : i32
    %c0_i32_0 = arith.constant 0 : i32
    %c0_i32_1 = arith.constant 0 : i32
    return %c0_i32, %c0_i32_0 : i32, i32
  }
  func.func @transform_4(%arg0: i32) -> (i32, i32) {
    %c0_i32 = arith.constant 0 : i32
    %c0_i32_0 = arith.constant 0 : i32
    %c0_i32_1 = arith.constant 0 : i32
    return %c0_i32, %c0_i32_0 : i32, i32
  }
  func.func @transform_5(%arg0: i32) -> (i32, i32, i32) {
    %c0_i32 = arith.constant 0 : i32
    %c0_i32_0 = arith.constant 0 : i32
    %c0_i32_1 = arith.constant 0 : i32
    return %arg0, %c0_i32, %c0_i32_0 : i32, i32, i32
  }
}

</mosaic_0001>

<llo_original>
// kernel: tpu_custom_call.1
$region0: #{tpu_custom_call.1}
  #allocation0 [shape = 'u32[]', space=smem, size = 0x4, offset = 0x4, fixed_abs, tag = 'smem constant byte address 0x4 - core index']
  #allocation1 [shape = 'u32[144,128]{1,0:T(1,128)}', space=vmem, size = 0x12000, scoped, tag = 'internal scratch']
  %s0 = inlined_call_operand.hbm [shape: f32[2,8,256], index: 0, kind: input, shape index: {}]
  %s1 = inlined_call_operand.vmem [shape: f32[8,2], index: 1, kind: input, shape index: {}]
  %s2 = inlined_call_operand.vmem [shape: f32[1,2], index: 2, kind: input, shape index: {}]
  %s3 = inlined_call_operand.vmem [shape: f32[2,8], index: 3, kind: input, shape index: {}]
  %s4 = inlined_call_operand.vmem [shape: f32[1,8], index: 4, kind: input, shape index: {}]
  %s5 = inlined_call_operand.hbm [shape: f32[2,8,256], index: 5, kind: output, shape index: {}]
  %s6 = sld [smem:[#allocation0]]
  $region34: #{tpu_custom_call.1} parent=0
    _
  %s8 = ssub.s32 1, %s6
  %s9 = scalar_select 0, %s8, %s6
  $region1: #{tpu_custom_call.1} parent=0
    #allocation2 [shape = 'u8[16384]{0}', space=vmem, size = 0x4000, scoped, tag = 'input window, operand 0, single buffered']
    #allocation3 [shape = 's32[1]{0}', space=sflag, size = 0x4, scoped, tag = 'scoped memory for tpu_custom_call.1']
    #allocation4 [shape = 's32[1]{0}', space=sflag, size = 0x4, scoped, tag = 'scoped memory for tpu_custom_call.1']
    #allocation5 [shape = 'u8[16384]{0}', space=vmem, size = 0x4000, scoped, tag = 'output window, operand 0, single buffered']
    %10 = vsyncpa [#allocation3], 0
    %11 = vsyncpa [#allocation4], 0
    // Predicated region
    $region2: #{tpu_custom_call.1} parent=1 // pred_check
      _
    $region3: #{tpu_custom_call.1} parent=1 // pred_check_branch
      %13 = sbr.rel (0) target = $region5
    $region4: #{tpu_custom_call.1} parent=1 // pred_region
      %s15 = ssub.s32 512, 512
      %16 = vsyncadd [#allocation3], %s15
      %s17 = sshll.u32 [#allocation2], 4
      %s18 = int_to_ptr.vmem [resolvable:$true] %s17
      %23 = dma.hbm_to_vmem [thread:$0]  %s0, 512, %s18, [#allocation3], 256, 256, 16
    $region5: #{tpu_custom_call.1} parent=1 // pred_fallthru
      _
    // Predicated region
    $region6: #{tpu_custom_call.1} parent=1 // pred_check
      _
    $region7: #{tpu_custom_call.1} parent=1 // pred_check_branch
      %25 = sbr.rel (0) target = $region9
    $region8: #{tpu_custom_call.1} parent=1 // pred_region
      _
    $region9: #{tpu_custom_call.1} parent=1 // pred_fallthru
      _
    // Predicated region
    $region10: #{tpu_custom_call.1} parent=1 // pred_check
      _
    $region11: #{tpu_custom_call.1} parent=1 // pred_check_branch
      %27 = sbr.rel (0) target = $region13
    $region12: #{tpu_custom_call.1} parent=1 // pred_region
      _
    $region13: #{tpu_custom_call.1} parent=1 // pred_fallthru
      _
    // Predicated region
    $region14: #{tpu_custom_call.1} parent=1 // pred_check
      _
    $region15: #{tpu_custom_call.1} parent=1 // pred_check_branch
      %29 = sbr.rel (0) target = $region17
    $region16: #{tpu_custom_call.1} parent=1 // pred_region
      _
    $region17: #{tpu_custom_call.1} parent=1 // pred_fallthru
      _
    // Predicated region
    $region18: #{tpu_custom_call.1} parent=1 // pred_check
      _
    $region19: #{tpu_custom_call.1} parent=1 // pred_check_branch
      %31 = sbr.rel (0) target = $region21
    $region20: #{tpu_custom_call.1} parent=1 // pred_region
      _
    $region21: #{tpu_custom_call.1} parent=1 // pred_fallthru
      _
    // Predicated region
    $region22: #{tpu_custom_call.1} parent=1 // pred_check
      _
    $region23: #{tpu_custom_call.1} parent=1 // pred_check_branch
      %33 = sbr.rel (0) target = $region25
    $region24: #{tpu_custom_call.1} parent=1 // pred_region
      %34 = dma.done [#allocation3], 512
    $region25: #{tpu_custom_call.1} parent=1 // pred_fallthru
      _
    %v35 = vld [vmem:[#allocation2] sm:$0xff]
    %v36 = vld [vmem:[#allocation2 + $0x8] sm:$0xff]
    %v37 = vld [vmem:[#allocation2 + $0x10] sm:$0xff]
    %v38 = vld [vmem:[#allocation2 + $0x18] sm:$0xff]
    %v39 = vadd.f32 %v35, %v36
    %40 = vadd.xlane.f32.xlu0 %v39
    %v41 = vpop.xlane.xlu0 %40
    %v42 = vadd.f32 %v37, %v38
    %43 = vadd.xlane.f32.xlu0 %v42
    %v44 = vpop.xlane.xlu0 %43
    %v45 = vmul.f32 %v41, 0.00390625
    %v46 = vmul.f32 %v44, 0.00390625
    %v47 = vld [vmem:[%s1] sm:$0xff]
    %v48 = vld [vmem:[%s2] sm:$0x1]
    %v50 = vlaneseq
    %v51 = vshrl.u32 %v50, 7
    %v52 = vsub.s32 0, %v51
    %v53 = vrot.slane %v48, %v52
    %v57 = vlaneseq
    %v58 = vand.u32 %v57, 127
    %v59 = vlaneseq
    %v60 = vshrl.u32 %v59, 7
    %v61 = vsub.s32 %v58, %v60
    %v62 = vrot.slane %v45, %v61
    %v63 = vlaneseq
    %v64 = vshrl.u32 %v63, 7
    %v65 = vsub.s32 %v58, %v64
    %v66 = vrot.slane %v46, %v65
    %vm67 = vcmask 1041409
    %v68 = vsel %vm67, %v66, %v62
    %vm69 = vcmask 64512
    %v70 = vsel %vm69, %v68, 0
    %72 = vmatprep.subr.mxu0 0.0
    %73 = vmatpush1.msra.mxu0 %v47
    %74 = vmatprep.subr.mxu0 0.0
    %75 = vmatpush1.msra.mxu0 0.0
    %76 = vmatprep.subr.mxu0 0.0
    %77 = vmatpush1.msra.mxu0 0.0
    %78 = vmatprep.subr.mxu0 0.0
    %79 = vmatpush1.msra.mxu0 0.0
    %80 = vmatprep.subr.mxu0 0.0
    %81 = vmatpush1.msra.mxu0 0.0
    %82 = vmatprep.subr.mxu0 0.0
    %83 = vmatpush1.msra.mxu0 0.0
    %84 = vmatprep.subr.mxu0 0.0
    %85 = vmatpush1.msra.mxu0 0.0
    %86 = vmatprep.subr.mxu0 0.0
    %87 = vmatpush1.msra.mxu0 0.0
    %88 = vmatprep.subr.mxu0 0.0
    %89 = vmatpush1.msra.mxu0 0.0
    %90 = vmatprep.subr.mxu0 0.0
    %91 = vmatpush1.msra.mxu0 0.0
    %92 = vmatprep.subr.mxu0 0.0
    %93 = vmatpush1.msra.mxu0 0.0
    %94 = vmatprep.subr.mxu0 0.0
    %95 = vmatpush1.msra.mxu0 0.0
    %96 = vmatprep.subr.mxu0 0.0
    %97 = vmatpush1.msra.mxu0 0.0
    %98 = vmatprep.subr.mxu0 0.0
    %99 = vmatpush1.msra.mxu0 0.0
    %100 = vmatprep.subr.mxu0 0.0
    %101 = vmatpush1.msra.mxu0 0.0
    %102 = vmatprep.subr.mxu0 0.0
    %103 = vmatpush1.msra.mxu0 0.0
    %104 = vmatprep.subr.mxu0 0.0
    %105 = vmatpush1.msra.mxu0 0.0
    %106 = vmatprep.subr.mxu0 0.0
    %107 = vmatpush1.msra.mxu0 0.0
    %108 = vmatprep.subr.mxu0 0.0
    %109 = vmatpush1.msra.mxu0 0.0
    %110 = vmatprep.subr.mxu0 0.0
    %111 = vmatpush1.msra.mxu0 0.0
    %112 = vmatprep.subr.mxu0 0.0
    %113 = vmatpush1.msra.mxu0 0.0
    %114 = vmatprep.subr.mxu0 0.0
    %115 = vmatpush1.msra.mxu0 0.0
    %116 = vmatprep.subr.mxu0 0.0
    %117 = vmatpush1.msra.mxu0 0.0
    %118 = vmatprep.subr.mxu0 0.0
    %119 = vmatpush1.msra.mxu0 0.0
    %120 = vmatprep.subr.mxu0 0.0
    %121 = vmatpush1.msra.mxu0 0.0
    %122 = vmatprep.subr.mxu0 0.0
    %123 = vmatpush1.msra.mxu0 0.0
    %124 = vmatprep.subr.mxu0 0.0
    %125 = vmatpush1.msra.mxu0 0.0
    %126 = vmatprep.subr.mxu0 0.0
    %127 = vmatpush1.msra.mxu0 0.0
    %128 = vmatprep.subr.mxu0 0.0
    %129 = vmatpush1.msra.mxu0 0.0
    %130 = vmatprep.subr.mxu0 0.0
    %131 = vmatpush1.msra.mxu0 0.0
    %132 = vmatprep.subr.mxu0 0.0
    %133 = vmatpush1.msra.mxu0 0.0
    %134 = vmatprep.subr.mxu0 0.0
    %135 = vmatpush1.msra.mxu0 0.0
    %136 = vmatprep.mubr.f32.mxu0 0.0
    %137 = vmatmul.mubr.f32.gmra.mrb[0].mxu0 %v70
    %v138 = vpop.f32.mrb[0].mxu0
    %v139 = vadd.f32 %v53, %v138
    %v140 = vpop.f32.mrb[0].mxu0
    %141 = vdwg.mxu0
    %v142 = vxor.u32 %v139, 2147483648
    %v143 = vmul.f32 %v142, 1.442695
    %v144 = vpow.pop %v143
    %v145 = vadd.f32 %v144, 1.0
    %v146 = vrcp.pop %v145
    %v147 = vmul.f32 1.0, %v146
    %v148 = vmul.f32 %v139, %v147
    %v149 = vld [vmem:[%s3] sm:$0x3]
    %v150 = vld [vmem:[%s4] sm:$0x1]
    %v152 = vlaneseq
    %v153 = vshrl.u32 %v152, 7
    %v154 = vsub.s32 0, %v153
    %v155 = vrot.slane %v150, %v154
    %vm157 = vcmask 15360
    %v159 = vsel %vm157, %v148, 0
    %vm161 = vcmask 1041408
    %v163 = vsel %vm161, %v149, 0
    %165 = vmatprep.subr.mxu0 0.0
    %166 = vmatpush1.msra.mxu0 %v163
    %167 = vmatprep.subr.mxu0 0.0
    %168 = vmatpush1.msra.mxu0 0.0
    %169 = vmatprep.subr.mxu0 0.0
    %170 = vmatpush1.msra.mxu0 0.0
    %171 = vmatprep.subr.mxu0 0.0
    %172 = vmatpush1.msra.mxu0 0.0
    %173 = vmatprep.subr.mxu0 0.0
    %174 = vmatpush1.msra.mxu0 0.0
    %175 = vmatprep.subr.mxu0 0.0
    %176 = vmatpush1.msra.mxu0 0.0
    %177 = vmatprep.subr.mxu0 0.0
    %178 = vmatpush1.msra.mxu0 0.0
    %179 = vmatprep.subr.mxu0 0.0
    %180 = vmatpush1.msra.mxu0 0.0
    %181 = vmatprep.subr.mxu0 0.0
    %182 = vmatpush1.msra.mxu0 0.0
    %183 = vmatprep.subr.mxu0 0.0
    %184 = vmatpush1.msra.mxu0 0.0
    %185 = vmatprep.subr.mxu0 0.0
    %186 = vmatpush1.msra.mxu0 0.0
    %187 = vmatprep.subr.mxu0 0.0
    %188 = vmatpush1.msra.mxu0 0.0
    %189 = vmatprep.subr.mxu0 0.0
    %190 = vmatpush1.msra.mxu0 0.0
    %191 = vmatprep.subr.mxu0 0.0
    %192 = vmatpush1.msra.mxu0 0.0
    %193 = vmatprep.subr.mxu0 0.0
    %194 = vmatpush1.msra.mxu0 0.0
    %195 = vmatprep.subr.mxu0 0.0
    %196 = vmatpush1.msra.mxu0 0.0
    %197 = vmatprep.subr.mxu0 0.0
    %198 = vmatpush1.msra.mxu0 0.0
    %199 = vmatprep.subr.mxu0 0.0
    %200 = vmatpush1.msra.mxu0 0.0
    %201 = vmatprep.subr.mxu0 0.0
    %202 = vmatpush1.msra.mxu0 0.0
    %203 = vmatprep.subr.mxu0 0.0
    %204 = vmatpush1.msra.mxu0 0.0
    %205 = vmatprep.subr.mxu0 0.0
    %206 = vmatpush1.msra.mxu0 0.0
    %207 = vmatprep.subr.mxu0 0.0
    %208 = vmatpush1.msra.mxu0 0.0
    %209 = vmatprep.subr.mxu0 0.0
    %210 = vmatpush1.msra.mxu0 0.0
    %211 = vmatprep.subr.mxu0 0.0
    %212 = vmatpush1.msra.mxu0 0.0
    %213 = vmatprep.subr.mxu0 0.0
    %214 = vmatpush1.msra.mxu0 0.0
    %215 = vmatprep.subr.mxu0 0.0
    %216 = vmatpush1.msra.mxu0 0.0
    %217 = vmatprep.subr.mxu0 0.0
    %218 = vmatpush1.msra.mxu0 0.0
    %219 = vmatprep.subr.mxu0 0.0
    %220 = vmatpush1.msra.mxu0 0.0
    %221 = vmatprep.subr.mxu0 0.0
    %222 = vmatpush1.msra.mxu0 0.0
    %223 = vmatprep.subr.mxu0 0.0
    %224 = vmatpush1.msra.mxu0 0.0
    %225 = vmatprep.subr.mxu0 0.0
    %226 = vmatpush1.msra.mxu0 0.0
    %227 = vmatprep.subr.mxu0 0.0
    %228 = vmatpush1.msra.mxu0 0.0
    %229 = vmatprep.mubr.f32.mxu0 0.0
    %230 = vmatmul.mubr.f32.gmra.mrb[0].mxu0 %v159
    %v231 = vpop.f32.mrb[0].mxu0
    %v232 = vadd.f32 %v155, %v231
    %v233 = vpop.f32.mrb[0].mxu0
    %234 = vdwg.mxu0
    %v235 = vxor.u32 %v232, 2147483648
    %v236 = vmul.f32 %v235, 1.442695
    %v237 = vpow.pop %v236
    %v238 = vadd.f32 %v237, 1.0
    %v239 = vrcp.pop %v238
    %v240 = vmul.f32 1.0, %v239
    %v241 = vlaneseq
    %v242 = vshrl.u32 %v241, 7
    %v243 = vsub.s32 0, %v242
    %v244 = vrot.slane %v240, %v243
    %246 = vbcast.lane.b32.xlu0 %v244, 256
    %v247 = vpop.permute.xlu0 %246
    %v248 = vlaneseq
    %v249 = vshrl.u32 %v248, 7
    %v250 = vsub.s32 1, %v249
    %v251 = vrot.slane %v240, %v250
    %253 = vbcast.lane.b32.xlu0 %v251, 256
    %v254 = vpop.permute.xlu0 %253
    %v255 = vmul.f32 %v247, %v35
    %v256 = vmul.f32 %v247, %v36
    %v257 = vmul.f32 %v254, %v37
    %v258 = vmul.f32 %v254, %v38
    %259 = vst [vmem:[#allocation5] sm:$0xff] %v255
    %260 = vst [vmem:[#allocation5 + $0x8] sm:$0xff] %v256
    %261 = vst [vmem:[#allocation5 + $0x10] sm:$0xff] %v257
    %262 = vst [vmem:[#allocation5 + $0x18] sm:$0xff] %v258
    // Predicated region
    $region26: #{tpu_custom_call.1} parent=1 // pred_check
      _
    $region27: #{tpu_custom_call.1} parent=1 // pred_check_branch
      %264 = sbr.rel (0) target = $region29
    $region28: #{tpu_custom_call.1} parent=1 // pred_region
      %s266 = ssub.s32 512, 512
      %267 = vsyncadd [#allocation4], %s266
      %s268 = sshll.u32 [#allocation5], 4
      %s269 = int_to_ptr.vmem [resolvable:$true] %s268
      %274 = dma.vmem_to_hbm [thread:$0]  %s269, 512, %s5, [#allocation4], 256, 256, 16
    $region29: #{tpu_custom_call.1} parent=1 // pred_fallthru
      _
    // Predicated region
    $region30: #{tpu_custom_call.1} parent=1 // pred_check
      _
    $region31: #{tpu_custom_call.1} parent=1 // pred_check_branch
      %276 = sbr.rel (0) target = $region33
    $region32: #{tpu_custom_call.1} parent=1 // pred_region
      %277 = dma.done [#allocation4], 512
    $region33: #{tpu_custom_call.1} parent=1 // pred_fallthru
      _
    %278 = vsyncpa [#allocation3], 1
    %279 = vsyncpa [#allocation4], 1

</llo_original>
